<compile_context>
chip_gen: v6e
topology: v6e:2x2x1
jax: 0.10.0
libtpu: 0.0.40
codegen_flags: <defaults>
</compile_context>

<pallas_src>
import jax
import jax.numpy as jnp
from jax.experimental import pallas as pl
from jax.experimental.pallas import tpu as pltpu


def _round_up(x, m):
    return ((x + m - 1) // m) * m


def _round_down(x, m):
    return (x // m) * m


def _cdiv(a, b):
    return -(-a // b)


# ----------------------------------------------------------------------------
# Pallas kernel: patch projection (matmul + bias), channel-major output write.
# ----------------------------------------------------------------------------
def _patch_proj_kernel(x_ref, w_ref, b_ref, o_ref):
    # x_ref: (1, tm, K) compute dtype   w_ref: (K, N) compute dtype
    # b_ref: (1, N) f32                 o_ref: (1, N, tm) out dtype
    acc = jnp.dot(x_ref[0], w_ref[...], preferred_element_type=jnp.float32)
    acc = acc + b_ref[...].astype(jnp.float32)                   # (tm, N)
    # Channel-major write: one small in-kernel 2-D transpose (XLU, overlapped
    # with the pipeline DMAs) instead of a full post-hoc XLA transpose pass.
    o_ref[0] = jnp.transpose(acc, (1, 0)).astype(o_ref.dtype)    # (N, tm)


def _choose_row_tile(B, M, target_rows=2048):
    """Rows of patches per grid step.

    tm is the lane dim of the output block -> keep it a multiple of 128
    (lane-dense stores) unless the whole per-image M is already smaller.
    """
    if M <= 128:
        return M
    tm = min(max(_round_down(target_rows, 128), 128), _round_down(M, 128))
    # v7x megacore: prefer at least 2 grid steps total so both TCs get work.
    if B * _cdiv(M, tm) < 2:
        tm = max(128, _round_up(_cdiv(M, 2), 128))
    return tm


# ----------------------------------------------------------------------------
# PatchEmbed forward (norm_layer=None, matching the module default).
# ----------------------------------------------------------------------------
def patch_embed_forward(x, conv_weight, conv_bias, patch_size,
                        *, compute_dtype=jnp.bfloat16, target_rows=2048):
    """x: [B, C, H, W] (NCHW, like PyTorch). Returns [B, embed_dim, Wh, Ww]."""
    ph, pw = patch_size
    B, C, H, W = x.shape
    N = conv_weight.shape[0]

    # Same padding behavior as the PyTorch module (pad right / bottom).
    pad_w = (pw - W % pw) % pw
    pad_h = (ph - H % ph) % ph
    if pad_w or pad_h:
        x = jnp.pad(x, ((0, 0), (0, 0), (0, pad_h), (0, pad_w)))
    Hp, Wp = H + pad_h, W + pad_w
    Wh, Ww = Hp // ph, Wp // pw
    M = Wh * Ww
    K = C * ph * pw

    # Patch extraction: single fused XLA cast+transpose pass, done in
    # compute_dtype so the pass moves half the bytes when compute_dtype=bf16.
    # (c, kh, kw) ordering matches the flattened Conv2d weight.
    xp = x.astype(compute_dtype).reshape(B, C, Wh, ph, Ww, pw)
    xp = jnp.transpose(xp, (0, 2, 4, 1, 3, 5)).reshape(B, M, K)

    # For tiny images (M <= 128) keep the in-kernel transpose sublane-aligned
    # by padding the patch count up to a multiple of 8 (negligible cost).
    M_pad = _round_up(M, 8) if M <= 128 else M
    if M_pad != M:
        xp = jnp.pad(xp, ((0, 0), (0, M_pad - M), (0, 0)))

    # Conv2d weight [N, C, ph, pw] -> [K, N]; bias -> (1, N) f32.
    w = conv_weight.reshape(N, K).T.astype(compute_dtype)
    b2 = conv_bias.reshape(1, N).astype(jnp.float32)

    out_dtype = x.dtype
    tm = _choose_row_tile(B, M_pad, target_rows)
    nM = _cdiv(M_pad, tm)

    out_bytes = B * M_pad * N * jnp.dtype(out_dtype).itemsize
    cost = pl.CostEstimate(
        flops=2 * B * M_pad * K * N,
        transcendentals=0,
        bytes_accessed=(xp.size * xp.dtype.itemsize
                        + w.size * w.dtype.itemsize
                        + b2.size * 4 + out_bytes))

    out = pl.pallas_call(
        _patch_proj_kernel,
        out_shape=jax.ShapeDtypeStruct((B, N, M_pad), out_dtype),
        grid_spec=pltpu.PrefetchScalarGridSpec(
            num_scalar_prefetch=0,
            grid=(B, nM),
            in_specs=[
                pl.BlockSpec((1, tm, K), lambda b, m: (b, m, 0)),
                # Weight / bias: constant index_map -> VMEM-resident across
                # the whole grid (tiny at Swin scale).
                pl.BlockSpec((K, N), lambda b, m: (0, 0)),
                pl.BlockSpec((1, N), lambda b, m: (0, 0)),
            ],
            out_specs=pl.BlockSpec((1, N, tm), lambda b, m: (b, 0, m)),
        ),
        compiler_params=pltpu.CompilerParams(
            dimension_semantics=("parallel", "parallel")),
        cost_estimate=cost,
    )(xp, w, b2)

    if M_pad != M:
        out = out[:, :, :M]
    # Contiguous split of the last dim -> free (no transpose pass).
    return out.reshape(B, N, Wh, Ww)


# ----------------------------------------------------------------------------
# Reference (pure JAX) for correctness checking.
# ----------------------------------------------------------------------------
def patch_embed_ref(x, conv_weight, conv_bias, patch_size):
    ph, pw = patch_size
    B, C, H, W = x.shape
    pad_w = (pw - W % pw) % pw
    pad_h = (ph - H % ph) % ph
    if pad_w or pad_h:
        x = jnp.pad(x, ((0, 0), (0, 0), (0, pad_h), (0, pad_w)))
    out = jax.lax.conv_general_dilated(
        x, conv_weight,
        window_strides=(ph, pw),
        padding="VALID",
        dimension_numbers=("NCHW", "OIHW", "NCHW"),
        precision=jax.lax.Precision.HIGHEST,
    )
    return out + conv_bias.reshape(1, -1, 1, 1)


if __name__ == "__main__":
    key = jax.random.PRNGKey(0)
    patch_size = (4, 4)

    # ---- Test 1: small shapes consistent with the module (bf16 compute). ----
    B, C, H, W = 2, 4, 16, 16
    embed_dim = 32
    k_x, k_w, k_b, k_x2, k_w2, k_b2 = jax.random.split(key, 6)
    x = jax.random.normal(k_x, (B, C, H, W), dtype=jnp.float32)
    conv_weight = jax.random.normal(
        k_w, (embed_dim, C, patch_size[0], patch_size[1]), dtype=jnp.float32) * 0.05
    conv_bias = jax.random.normal(k_b, (embed_dim,), dtype=jnp.float32) * 0.01

    out = patch_embed_forward(x, conv_weight, conv_bias, patch_size)
    out = jax.block_until_ready(out)
    ref = patch_embed_ref(x, conv_weight, conv_bias, patch_size)
    assert out.shape == (B, embed_dim, H // patch_size[0], W // patch_size[1])
    assert out.dtype == x.dtype
    assert jnp.allclose(out, ref, atol=2e-2, rtol=2e-2)

    # ---- Test 2: Swin-like dims (C=3, embed_dim=96) and non-divisible
    # spatial size (exercises right/bottom padding + partial M tiles). ----
    B2, C2, H2, W2 = 1, 3, 17, 18
    embed_dim2 = 96
    x2 = jax.random.normal(k_x2, (B2, C2, H2, W2), dtype=jnp.float32)
    conv_weight2 = jax.random.normal(
        k_w2, (embed_dim2, C2, patch_size[0], patch_size[1]), dtype=jnp.float32) * 0.05
    conv_bias2 = jax.random.normal(k_b2, (embed_dim2,), dtype=jnp.float32) * 0.01

    out2 = patch_embed_forward(x2, conv_weight2, conv_bias2, patch_size)
    out2 = jax.block_until_ready(out2)
    ref2 = patch_embed_ref(x2, conv_weight2, conv_bias2, patch_size)
    assert out2.shape == (B2, embed_dim2, (H2 + 3) // 4, (W2 + 2) // 4)
    assert jnp.allclose(out2, ref2, atol=2e-2, rtol=2e-2)

    # ---- Test 3: f32 compute path (precision knob). ----
    out3 = patch_embed_forward(x, conv_weight, conv_bias, patch_size,
                               compute_dtype=jnp.float32)
    out3 = jax.block_until_ready(out3)
    assert jnp.allclose(out3, ref, atol=1e-2, rtol=1e-2)

    print("KERNEL_OK")
</pallas_src>

<mosaic_0001>
module attributes {stable_mosaic.version = 11 : i64} {
  func.func @_patch_proj_kernel(%arg0: i32, %arg1: i32, %arg2: memref<1x16x64xbf16, #tpu.memory_space<vmem>>, %arg3: memref<64x32xbf16, #tpu.memory_space<vmem>>, %arg4: memref<1x32xf32, #tpu.memory_space<vmem>>, %arg5: memref<1x32x16xf32, #tpu.memory_space<vmem>>) attributes {dimension_semantics = [#tpu.dimension_semantics<parallel>, #tpu.dimension_semantics<parallel>], iteration_bounds = array<i64: 2, 1>, scalar_prefetch = 0 : i64, scratch_operands = 0 : i64, tpu.core_type = #tpu.core_type<tc>, window_params = [{transform_indices = @transform_0, window_bounds = array<i64: 1, 16, 64>}, {pipeline_mode = #tpu.pipeline_mode<synchronous>, transform_indices = @transform_1, window_bounds = array<i64: 64, 32>}, {pipeline_mode = #tpu.pipeline_mode<synchronous>, transform_indices = @transform_2, window_bounds = array<i64: 1, 32>}, {transform_indices = @transform_3, window_bounds = array<i64: 1, 32, 16>}]} {
    %c0 = arith.constant 0 : index
    %c0_0 = arith.constant 0 : index
    %c0_1 = arith.constant 0 : index
    %0 = vector.load %arg2[%c0, %c0_0, %c0_1] : memref<1x16x64xbf16, #tpu.memory_space<vmem>>, vector<1x16x64xbf16>
    %1 = vector.shape_cast %0 : vector<1x16x64xbf16> to vector<16x64xbf16>
    %c0_2 = arith.constant 0 : index
    %c0_3 = arith.constant 0 : index
    %2 = vector.load %arg3[%c0_2, %c0_3] : memref<64x32xbf16, #tpu.memory_space<vmem>>, vector<64x32xbf16>
    %cst = arith.constant dense<0.000000e+00> : vector<16x32xf32>
    %3 = tpu.matmul %1, %2, %cst {dimension_numbers = #tpu.dot_dimension_numbers<[1], [0], [0], [1], [0, 0, 1, 1], [], []>} : vector<16x64xbf16>, vector<64x32xbf16>, vector<16x32xf32> -> vector<16x32xf32>
    %c0_4 = arith.constant 0 : index
    %c0_5 = arith.constant 0 : index
    %4 = vector.load %arg4[%c0_4, %c0_5] : memref<1x32xf32, #tpu.memory_space<vmem>>, vector<1x32xf32>
    %5 = vector.broadcast %4 : vector<1x32xf32> to vector<16x32xf32>
    %6 = arith.addf %3, %5 : vector<16x32xf32>
    %7 = tpu.transpose %6, [1, 0] : vector<16x32xf32> -> vector<32x16xf32>
    %c0_6 = arith.constant 0 : index
    %c0_7 = arith.constant 0 : index
    %c0_8 = arith.constant 0 : index
    %8 = vector.load %arg5[%c0_6, %c0_7, %c0_8] : memref<1x32x16xf32, #tpu.memory_space<vmem>>, vector<1x32x16xf32>
    %9 = vector.shape_cast %8 : vector<1x32x16xf32> to vector<32x16xf32>
    %10 = vector.shape_cast %7 : vector<32x16xf32> to vector<1x32x16xf32>
    tpu.vector_store %arg5[%c0_6, %c0_7, %c0_8], %10 {strides = array<i32>} : memref<1x32x16xf32, #tpu.memory_space<vmem>>, vector<1x32x16xf32>,
    return
  }
  func.func @transform_0(%arg0: i32, %arg1: i32) -> (i32, i32, i32) {
    %c0_i32 = arith.constant 0 : i32
    %c0_i32_0 = arith.constant 0 : i32
    return %arg0, %arg1, %c0_i32 : i32, i32, i32
  }
  func.func @transform_1(%arg0: i32, %arg1: i32) -> (i32, i32) {
    %c0_i32 = arith.constant 0 : i32
    %c0_i32_0 = arith.constant 0 : i32
    %c0_i32_1 = arith.constant 0 : i32
    return %c0_i32, %c0_i32_0 : i32, i32
  }
  func.func @transform_2(%arg0: i32, %arg1: i32) -> (i32, i32) {
    %c0_i32 = arith.constant 0 : i32
    %c0_i32_0 = arith.constant 0 : i32
    %c0_i32_1 = arith.constant 0 : i32
    return %c0_i32, %c0_i32_0 : i32, i32
  }
  func.func @transform_3(%arg0: i32, %arg1: i32) -> (i32, i32, i32) {
    %c0_i32 = arith.constant 0 : i32
    %c0_i32_0 = arith.constant 0 : i32
    return %arg0, %c0_i32, %arg1 : i32, i32, i32
  }
}

</mosaic_0001>

<llo_original>
// kernel: tpu_custom_call.1
$region0: #{tpu_custom_call.1}
  #allocation0 [shape = 'u32[]', space=smem, size = 0x4, offset = 0x4, fixed_abs, tag = 'smem constant byte address 0x4 - core index']
  #allocation1 [shape = 'u32[144,128]{1,0:T(1,128)}', space=vmem, size = 0x12000, scoped, tag = 'internal scratch']
  %s0 = inlined_call_operand.vmem [shape: bf16[2,16,64], index: 0, kind: input, shape index: {}]
  %s1 = inlined_call_operand.vmem [shape: bf16[64,32], index: 1, kind: input, shape index: {}]
  %s2 = inlined_call_operand.vmem [shape: f32[1,32], index: 2, kind: input, shape index: {}]
  %s3 = inlined_call_operand.vmem [shape: f32[2,32,16], index: 3, kind: output, shape index: {}]
  %s4 = sld [smem:[#allocation0]]
  $region45: #{tpu_custom_call.1} parent=0
    _
  %s6 = ssub.s32 1, %s4
  %s7 = scalar_select 0, %s6, %s4
  loop: start=0, step=1, limit=4
  $region2: #{tpu_custom_call.1} parent=0 // loop_pre_header
    _
  $region3: #{tpu_custom_call.1} parent=0 // loop_header
    %s9 = sphi 0, %s13
    %p10 = scmp.ge.s32.totalorder %s9, 4
    %s16 = sphi 0, %s28
    %s17 = sphi 0, %s24
    %s18 = sphi 0, %s16
    %s19 = sphi 0, %s17
    %s20 = sphi 0, %s18
    %s21 = sphi 0, %s19
    %s33 = sphi 0, %s35
    %s36 = sphi 0, %s33
    %s37 = sphi 0, %s36
    %s53 = sphi 0, %s37
    %s57 = sphi 0, %s57
    %s59 = sphi 0, %s57
    %s60 = sphi 0, %s59
    %s74 = sphi 0, %s60
    %s78 = sphi 0, %s78
    %s80 = sphi 0, %s78
    %s81 = sphi 0, %s80
    %s95 = sphi 0, %s81
    %s103 = sphi 0, %s105
    %s106 = sphi 0, %s103
    %s107 = sphi 0, %s106
    %s123 = sphi 0, %s107
  $region4: #{tpu_custom_call.1} parent=0 // loop_header_branch
    %12 = sbr.rel (%p10) target = $region8
  $region5: #{tpu_custom_call.1} parent=0 // loop_body
    %s14 = ssub.s32 %s9, 1
    %s15 = ssub.s32 %s9, 2
    %s22 = sadd.s32 1, %s17
    %p23 = scmp.ge.s32.totalorder %s22, 1
    %s24 = scalar_select %p23, 0, %s22
    %s25 = sadd.s32 1, %s16
    %s26 = scalar_select %p23, %s25, %s16
    %p27 = scmp.ge.s32.totalorder %s26, 2
    %s28 = scalar_select %p27, 0, %s26
    %s29 = ssub.s32 %s16, %s28
    %s30 = ssub.s32 %s17, %s24
    %s31 = sor.u32 %s29, %s30
    %p32 = scmp.eq.s32.totalorder %s31, 0
    %s34 = sadd.s32 %s33, 1
    %s35 = scalar_select %p32, %s33, %s34
    %p38 = pneg %p32
    %p39 = scmp.eq.s32.totalorder %s9, 1
    %p40 = por %p38, %p39
    %p41 = scmp.ne.s32.totalorder %s33, %s36
    %p42 = scmp.eq.s32.totalorder %s9, 0
    %p43 = por %p41, %p42
    %p44 = scmp.ne.s32.totalorder %s33, %s36
    %p45 = scmp.eq.s32.totalorder %s14, 1
    %p46 = por %p44, %p45
    %p47 = scmp.ne.s32.totalorder %s36, %s37
    %p48 = scmp.eq.s32.totalorder %s14, 0
    %p49 = por %p47, %p48
    %p50 = scmp.ne.s32.totalorder %s36, %s37
    %p51 = scmp.eq.s32.totalorder %s15, 1
    %p52 = por %p50, %p51
    %p54 = scmp.ne.s32.totalorder %s37, %s53
    %p55 = scmp.eq.s32.totalorder %s15, 0
    %p56 = por %p54, %p55
    %s58 = sadd.s32 %s57, 1
    %p61 = scmp.eq.s32.totalorder %s9, 1
    %p62 = scmp.ne.s32.totalorder %s57, %s59
    %p63 = scmp.eq.s32.totalorder %s9, 0
    %p64 = por %p62, %p63
    %p65 = scmp.ne.s32.totalorder %s57, %s59
    %p66 = scmp.eq.s32.totalorder %s14, 1
    %p67 = por %p65, %p66
    %p68 = scmp.ne.s32.totalorder %s59, %s60
    %p69 = scmp.eq.s32.totalorder %s14, 0
    %p70 = por %p68, %p69
    %p71 = scmp.ne.s32.totalorder %s59, %s60
    %p72 = scmp.eq.s32.totalorder %s15, 1
    %p73 = por %p71, %p72
    %p75 = scmp.ne.s32.totalorder %s60, %s74
    %p76 = scmp.eq.s32.totalorder %s15, 0
    %p77 = por %p75, %p76
    %s79 = sadd.s32 %s78, 1
    %p82 = scmp.eq.s32.totalorder %s9, 1
    %p83 = scmp.ne.s32.totalorder %s78, %s80
    %p84 = scmp.eq.s32.totalorder %s9, 0
    %p85 = por %p83, %p84
    %p86 = scmp.ne.s32.totalorder %s78, %s80
    %p87 = scmp.eq.s32.totalorder %s14, 1
    %p88 = por %p86, %p87
    %p89 = scmp.ne.s32.totalorder %s80, %s81
    %p90 = scmp.eq.s32.totalorder %s14, 0
    %p91 = por %p89, %p90
    %p92 = scmp.ne.s32.totalorder %s80, %s81
    %p93 = scmp.eq.s32.totalorder %s15, 1
    %p94 = por %p92, %p93
    %p96 = scmp.ne.s32.totalorder %s81, %s95
    %p97 = scmp.eq.s32.totalorder %s15, 0
    %p98 = por %p96, %p97
    %s99 = ssub.s32 %s16, %s28
    %s100 = ssub.s32 %s17, %s24
    %s101 = sor.u32 %s99, %s100
    %p102 = scmp.eq.s32.totalorder %s101, 0
    %s104 = sadd.s32 %s103, 1
    %s105 = scalar_select %p102, %s103, %s104
    %p108 = pneg %p102
    %p109 = scmp.eq.s32.totalorder %s9, 1
    %p110 = por %p108, %p109
    %p111 = scmp.ne.s32.totalorder %s103, %s106
    %p112 = scmp.eq.s32.totalorder %s9, 0
    %p113 = por %p111, %p112
    %p114 = scmp.ne.s32.totalorder %s103, %s106
    %p115 = scmp.eq.s32.totalorder %s14, 1
    %p116 = por %p114, %p115
    %p117 = scmp.ne.s32.totalorder %s106, %s107
    %p118 = scmp.eq.s32.totalorder %s14, 0
    %p119 = por %p117, %p118
    %p120 = scmp.ne.s32.totalorder %s106, %s107
    %p121 = scmp.eq.s32.totalorder %s15, 1
    %p122 = por %p120, %p121
    %p124 = scmp.ne.s32.totalorder %s107, %s123
    %p125 = scmp.eq.s32.totalorder %s15, 0
    %p126 = por %p124, %p125
    %p127 = scmp.le.s32.totalorder 1, %s9
    %p128 = scmp.lt.s32.totalorder %s9, 3
    %p129 = pnand %p127, %p128
    %p130 = pneg %p129
    // Predicated region
    $region9: #{tpu_custom_call.1} parent=5 // pred_check
      _
    $region10: #{tpu_custom_call.1} parent=5 // pred_check_branch
      %132 = sbr.rel (%p129) target = $region12
    $region11: #{tpu_custom_call.1} parent=5 // pred_region
      %s133 = ssub.s32 %s9, 1
      // Predicated region
      $region13: #{tpu_custom_call.1} parent=11 // pred_check
        %p134 = pneg %p70
      $region14: #{tpu_custom_call.1} parent=11 // pred_check_branch
        %136 = sbr.rel (%p134) target = $region16
      $region15: #{tpu_custom_call.1} parent=11 // pred_region
        _
      $region16: #{tpu_custom_call.1} parent=11 // pred_fallthru
        _
      // Predicated region
      $region17: #{tpu_custom_call.1} parent=11 // pred_check
        %p137 = pneg %p91
      $region18: #{tpu_custom_call.1} parent=11 // pred_check_branch
        %139 = sbr.rel (%p137) target = $region20
      $region19: #{tpu_custom_call.1} parent=11 // pred_region
        _
      $region20: #{tpu_custom_call.1} parent=11 // pred_fallthru
        _
    $region12: #{tpu_custom_call.1} parent=5 // pred_fallthru
      _
    %p140 = scmp.lt.s32.totalorder %s9, 2
    // Predicated region
    $region21: #{tpu_custom_call.1} parent=5 // pred_check
      %p141 = pneg %p140
    $region22: #{tpu_custom_call.1} parent=5 // pred_check_branch
      %143 = sbr.rel (%p141) target = $region24
    $region23: #{tpu_custom_call.1} parent=5 // pred_region
      // Predicated region
      $region25: #{tpu_custom_call.1} parent=23 // pred_check
        %p144 = pneg %p43
      $region26: #{tpu_custom_call.1} parent=23 // pred_check_branch
        %146 = sbr.rel (%p144) target = $region28
      $region27: #{tpu_custom_call.1} parent=23 // pred_region
        %s147 = smul.u32 2, %s17
        %p148 = scmp.lt.s32.totalorder %s16, 1
        %s149 = scalar_select %p148, %s16, 1
        %p150 = scmp.lt.s32.totalorder %s147, 1
        %s151 = scalar_select %p150, %s147, 1
        %s152 = smul.addr %s149, 2
        %s153 = sadd.s32 %s151, %s152
        %s154 = smul.addr %s153, 4
        %s155 = scalar_lea.vmem %s0, %s154
        %s156 = smul.u32 2, %s17
      $region28: #{tpu_custom_call.1} parent=23 // pred_fallthru
        _
    $region24: #{tpu_custom_call.1} parent=5 // pred_fallthru
      _
    %p157 = scmp.le.s32.totalorder 1, %s9
    %p158 = scmp.lt.s32.totalorder %s9, 3
    %p159 = pnand %p157, %p158
    %p160 = pneg %p159
    // Predicated region
    $region29: #{tpu_custom_call.1} parent=5 // pred_check
      _
    $region30: #{tpu_custom_call.1} parent=5 // pred_check_branch
      %162 = sbr.rel (%p159) target = $region32
    $region31: #{tpu_custom_call.1} parent=5 // pred_region
      %s163 = ssub.s32 %s9, 1
      %s164 = smul.u32 2, %s19
      %p165 = scmp.lt.s32.totalorder %s18, 1
      %s166 = scalar_select %p165, %s18, 1
      %p167 = scmp.lt.s32.totalorder %s164, 1
      %s168 = scalar_select %p167, %s164, 1
      %s169 = smul.addr %s166, 2
      %s170 = sadd.s32 %s168, %s169
      %s171 = smul.addr %s170, 4
      %s172 = scalar_lea.vmem %s0, %s171
      %p173 = pneg %p49
      %p174 = pneg %p46
      %p175 = pneg %p70
      %p176 = pneg %p67
      %p177 = pneg %p91
      %p178 = pneg %p88
      %p179 = pneg %p119
      %p180 = pneg %p116
      %p181 = scmp.lt.s32.totalorder %s18, 1
      %s182 = scalar_select %p181, %s18, 1
      %p183 = scmp.lt.s32.totalorder %s19, 0
      %s184 = scalar_select %p183, %s19, 0
      %s185 = smul.addr %s182, 4
      %s186 = sadd.s32 %s184, %s185
      %s187 = smul.addr %s186, 8
      %s188 = scalar_lea.vmem %s3, %s187
      %s189 = smul.u32 2, %s19
      %p190 = scmp.lt.s32.totalorder %s18, 1
      %s191 = scalar_select %p190, %s18, 1
      %p192 = scmp.lt.s32.totalorder %s189, 1
      %s193 = scalar_select %p192, %s189, 1
      %s194 = smul.addr %s191, 2
      %s195 = sadd.s32 %s193, %s194
      %s196 = smul.addr %s195, 4
      %s197 = scalar_lea.vmem %s0, %s196
      %s198 = smul.u32 2, %s19
      %p199 = scmp.lt.s32.totalorder %s18, 1
      %s200 = scalar_select %p199, %s18, 1
      %p201 = scmp.lt.s32.totalorder %s19, 0
      %s202 = scalar_select %p201, %s19, 0
      %s203 = smul.addr %s200, 4
      %s204 = sadd.s32 %s202, %s203
      %s205 = smul.addr %s204, 8
      %s206 = scalar_lea.vmem %s3, %s205
      %v208 = vld [vmem:[%s197] sm:$0xf]
      %v209 = vld [vmem:[%s197 + $0x4] sm:$0xf]
      %v210 = vld [vmem:[%s1] sm:$0xf]
      %v211 = vld [vmem:[%s1 + $0x4] sm:$0xf]
      %v212 = vld [vmem:[%s1 + $0x8] sm:$0xf]
      %v213 = vld [vmem:[%s1 + $0xc] sm:$0xf]
      %v214 = vld [vmem:[%s1 + $0x10] sm:$0xf]
      %v215 = vld [vmem:[%s1 + $0x14] sm:$0xf]
      %v216 = vld [vmem:[%s1 + $0x18] sm:$0xf]
      %v217 = vld [vmem:[%s1 + $0x1c] sm:$0xf]
      %v218 = vld [vmem:[%s2] sm:$0x1]
      %v220 = vlaneseq
      %v221 = vshrl.u32 %v220, 7
      %v222 = vsub.s32 0, %v221
      %v223 = vrot.slane %v218, %v222
      %v227 = vunpack.c.l.b16 %v208
      %v228 = vunpack.c.l.b16 %v209
      %v229 = vpack.c.b16 %v228, %v227
      %v238 = vunpack.c.l.b16 %v210
      %v239 = vunpack.c.l.b16 %v211
      %v240 = vunpack.c.l.b16 %v212
      %v241 = vunpack.c.l.b16 %v213
      %v242 = vunpack.c.l.b16 %v214
      %v243 = vunpack.c.l.b16 %v215
      %v244 = vunpack.c.l.b16 %v216
      %v245 = vunpack.c.l.b16 %v217
      %v246 = vpack.c.b16 %v239, %v238
      %v247 = vpack.c.b16 %v241, %v240
      %v248 = vpack.c.b16 %v243, %v242
      %v249 = vpack.c.b16 %v245, %v244
      %vm254 = vcmask 523264
      %v256 = vsel %vm254, %v229, 0
      %258 = vmatprep.subr.bf16.mxu0 0
      %259 = vmatpush1.bf16.msra.mxu0 0
      %260 = vmatprep.subr.bf16.mxu0 0
      %261 = vmatpush1.bf16.msra.mxu0 0
      %262 = vmatprep.subr.bf16.mxu0 0
      %263 = vmatpush1.bf16.msra.mxu0 0
      %264 = vmatprep.subr.bf16.mxu0 0
      %265 = vmatpush1.bf16.msra.mxu0 0
      %266 = vmatprep.subr.bf16.mxu0 0
      %267 = vmatpush1.bf16.msra.mxu0 %v249
      %268 = vmatprep.subr.bf16.mxu0 0
      %269 = vmatpush1.bf16.msra.mxu0 %v248
      %270 = vmatprep.subr.bf16.mxu0 0
      %271 = vmatpush1.bf16.msra.mxu0 %v247
      %272 = vmatprep.subr.bf16.mxu0 0
      %273 = vmatpush1.bf16.msra.mxu0 %v246
      %274 = vmatprep.subr.bf16.mxu0 0
      %275 = vmatpush2.bf16.msra.mxu0 0
      %276 = vmatprep.subr.bf16.mxu0 0
      %277 = vmatpush2.bf16.msra.mxu0 0
      %278 = vmatprep.subr.bf16.mxu0 0
      %279 = vmatpush2.bf16.msra.mxu0 0
      %280 = vmatprep.subr.bf16.mxu0 0
      %281 = vmatpush2.bf16.msra.mxu0 0
      %282 = vmatprep.subr.bf16.mxu0 0
      %283 = vmatpush2.bf16.msra.mxu0 0
      %284 = vmatprep.subr.bf16.mxu0 0
      %285 = vmatpush2.bf16.msra.mxu0 0
      %286 = vmatprep.subr.bf16.mxu0 0
      %287 = vmatpush2.bf16.msra.mxu0 0
      %288 = vmatprep.subr.bf16.mxu0 0
      %289 = vmatpush2.bf16.msra.mxu0 0
      %290 = vmatprep.mubr.bf16.mxu0 0
      %291 = vmatmul.mubr.bf16.gmra.mxu0 %v256
      %v292 = vpop.f32.mrf.mxu0
      %v293 = vadd.f32 %v223, %v292
      %v294 = vpop.f32.mrf.mxu0
      %v295 = vpop.f32.mrf.mxu0
      %v296 = vadd.f32 %v223, %v295
      %v297 = vpop.f32.mrf.mxu0
      %298 = vdwg.mxu0
      %299 = vxpose.xlu0.b32.start [1/16] %v293, 128
      %300 = vxpose.xlu0.b32.cont [2/16] %v296, 128
      %301 = vxpose.xlu0.b32.cont [3/16] 0.0, 128
      %302 = vxpose.xlu0.b32.cont [4/16] 0.0, 128
      %303 = vxpose.xlu0.b32.cont [5/16] 0.0, 128
      %304 = vxpose.xlu0.b32.cont [6/16] 0.0, 128
      %305 = vxpose.xlu0.b32.cont [7/16] 0.0, 128
      %306 = vxpose.xlu0.b32.cont [8/16] 0.0, 128
      %307 = vxpose.xlu0.b32.cont [9/16] 0.0, 128
      %308 = vxpose.xlu0.b32.cont [10/16] 0.0, 128
      %309 = vxpose.xlu0.b32.cont [11/16] 0.0, 128
      %310 = vxpose.xlu0.b32.cont [12/16] 0.0, 128
      %311 = vxpose.xlu0.b32.cont [13/16] 0.0, 128
      %312 = vxpose.xlu0.b32.cont [14/16] 0.0, 128
      %313 = vxpose.xlu0.b32.cont [15/16] 0.0, 128
      %314 = vxpose.xlu0.b32.end [16/16] 0.0, 128
      %v315 = vpop.trf.xlu0
      %v316 = vpop.trf.xlu0
      %v317 = vpop.trf.xlu0
      %v318 = vpop.trf.xlu0
      %v319 = vpop.trf.xlu0
      %v320 = vpop.trf.xlu0
      %v321 = vpop.trf.xlu0
      %v322 = vpop.trf.xlu0
      %v323 = vpop.trf.xlu0
      %v324 = vpop.trf.xlu0
      %v325 = vpop.trf.xlu0
      %v326 = vpop.trf.xlu0
      %v327 = vpop.trf.xlu0
      %v328 = vpop.trf.xlu0
      %v329 = vpop.trf.xlu0
      %v330 = vpop.trf.xlu0
      %vm331 = vcmask 130048
      %332 = vst.msk [vmem:[%s206] sm:$0xff] %vm331, %v315
      %333 = vst.msk [vmem:[%s206 + $0x8] sm:$0xff] %vm331, %v316
      %334 = vst.msk [vmem:[%s206 + $0x10] sm:$0xff] %vm331, %v317
      %335 = vst.msk [vmem:[%s206 + $0x18] sm:$0xff] %vm331, %v318
      %p336 = scmp.lt.s32.totalorder %s18, 1
      %s337 = scalar_select %p336, %s18, 1
      %p338 = scmp.lt.s32.totalorder %s19, 0
      %s339 = scalar_select %p338, %s19, 0
      %s340 = smul.addr %s337, 4
      %s341 = sadd.s32 %s339, %s340
      %s342 = smul.addr %s341, 8
      %s343 = scalar_lea.vmem %s3, %s342
      // Predicated region
      $region33: #{tpu_custom_call.1} parent=31 // pred_check
        %p344 = pneg %p116
      $region34: #{tpu_custom_call.1} parent=31 // pred_check_branch
        %346 = sbr.rel (%p344) target = $region36
      $region35: #{tpu_custom_call.1} parent=31 // pred_region
        _
      $region36: #{tpu_custom_call.1} parent=31 // pred_fallthru
        _
    $region32: #{tpu_custom_call.1} parent=5 // pred_fallthru
      _
    %p347 = scmp.le.s32.totalorder 2, %s9
    // Predicated region
    $region37: #{tpu_custom_call.1} parent=5 // pred_check
      %p348 = pneg %p347
    $region38: #{tpu_custom_call.1} parent=5 // pred_check_branch
      %350 = sbr.rel (%p348) target = $region40
    $region39: #{tpu_custom_call.1} parent=5 // pred_region
      %s351 = ssub.s32 %s9, 2
      // Predicated region
      $region41: #{tpu_custom_call.1} parent=39 // pred_check
        %p352 = pneg %p122
      $region42: #{tpu_custom_call.1} parent=39 // pred_check_branch
        %354 = sbr.rel (%p352) target = $region44
      $region43: #{tpu_custom_call.1} parent=39 // pred_region
        %p355 = scmp.lt.s32.totalorder %s20, 1
        %s356 = scalar_select %p355, %s20, 1
        %p357 = scmp.lt.s32.totalorder %s21, 0
        %s358 = scalar_select %p357, %s21, 0
        %s359 = smul.addr %s356, 4
        %s360 = sadd.s32 %s358, %s359
        %s361 = smul.addr %s360, 8
        %s362 = scalar_lea.vmem %s3, %s361
      $region44: #{tpu_custom_call.1} parent=39 // pred_fallthru
        _
    $region40: #{tpu_custom_call.1} parent=5 // pred_fallthru
      _
  $region6: #{tpu_custom_call.1} parent=0 // loop_footer
    %s13 = sadd.s32 1, %s9
  $region7: #{tpu_custom_call.1} parent=0 // loop_footer_branch
    %8 = sbr.rel target = $region3
  $region8: #{tpu_custom_call.1} parent=0 // loop_exit
    _

</llo_original>
